<compile_context>
chip_gen: v6e
topology: v6e:2x2x1
jax: 0.10.0
libtpu: 0.0.40
codegen_flags: <defaults>
</compile_context>

<pallas_src>
import functools

import jax
import jax.numpy as jnp
from jax import lax
from jax.experimental import pallas as pl
from jax.experimental.pallas import tpu as pltpu


def _round_up(x, m):
    return ((x + m - 1) // m) * m


def _budgets():
    """(per-block HBM byte budget, vmem_limit_bytes) chosen per TPU generation."""
    try:
        vmem = pltpu.get_tpu_info().vmem_capacity_bytes
    except Exception:
        vmem = None
    if vmem is None:
        return 8 << 20, 40 << 20            # unknown generation: conservative
    if vmem >= (100 << 20):                 # v5e / v6e: 128 MiB physical VMEM
        return 16 << 20, 80 << 20
    return 12 << 20, 48 << 20               # v7x: 64 MiB physical VMEM


def _choose_tiles(n, m, itemsize, block_bytes):
    """Pick (tile_n, tile_m) so one input block moves ~block_bytes of HBM."""
    sub = max(8, 32 // itemsize)            # dtype sublane tile: f32=8, bf16=16, i8/fp8=32
    elems = max(block_bytes // itemsize, sub * 128)
    m_full = _round_up(m, 128)
    n_full = _round_up(n, sub)
    if n_full * m_full <= elems:
        return n_full, m_full               # whole problem fits a single block
    if m_full * sub <= elems:
        # Full rows fit: fully contiguous HBM reads; spend the rest on rows.
        tile_m = m_full
        tile_n = min(n_full, max(sub, (elems // m_full) // sub * sub))
    else:
        # Even one sublane tile of full rows exceeds the budget: cap lane width.
        tile_n = sub
        tile_m = max(128, (elems // sub) // 128 * 128)
    return tile_n, tile_m


def oce_kernel(w_ref, x_ref, o_ref, *, n_rows, tile_n, blocks_per_split,
               num_row_blocks, need_mask, need_valid):
    # w_ref : (1,) SMEM scalar parameter w
    # x_ref : (tile_n, tile_m) VMEM input tile
    # o_ref : (1, 1, tile_m) f32 partial column sums, resident across the
    #         reduction (k) axis for each (split, lane-block) pair.
    s = pl.program_id(1)                    # split axis (parallel)
    k = pl.program_id(2)                    # reduction axis (arbitrary, innermost)

    @pl.when(k == 0)
    def _init():
        o_ref[...] = jnp.zeros_like(o_ref)

    w = w_ref[0]
    rb = s * blocks_per_split + k           # global row-block index (pre-clamp)

    def accumulate(mask_rows):
        x = x_ref[...].astype(jnp.float32)
        # w inside the exponent matches the reference mean(exp(-(x + w)))
        # exactly (same overflow behavior); the add is hidden under HBM.
        e = jnp.exp(-(x + w))
        if mask_rows:
            row = rb * tile_n + lax.broadcasted_iota(jnp.int32, (x.shape[0], 1), 0)
            e = jnp.where(row < n_rows, e, 0.0)
        o_ref[...] += jnp.sum(e, axis=0).reshape(o_ref.shape)

    if need_mask:
        full = (rb + 1) * tile_n <= n_rows
        if need_valid:
            valid = rb < num_row_blocks
            cond_fast = valid & full
            cond_mask = valid & jnp.logical_not(full)
        else:
            cond_fast = full
            cond_mask = jnp.logical_not(full)

        @pl.when(cond_fast)
        def _fast():                        # common path: no per-element mask
            accumulate(False)

        @pl.when(cond_mask)
        def _masked():                      # only the ragged edge block(s)
            accumulate(True)
    elif need_valid:
        @pl.when(rb < num_row_blocks)
        def _guarded():
            accumulate(False)
    else:
        accumulate(False)


def oce_forward(x, w, *, block_bytes=None):
    """OCE forward: w - mean(1 - exp(-(x + w)), axis=0).

    x : (N, *) floating point (f32 / bf16 both fine)
    w : scalar float parameter
    returns: (*) float32
    """
    n = x.shape[0]
    extra_shape = x.shape[1:]
    m = 1
    for d in extra_shape:
        m *= d
    itemsize = x.dtype.itemsize

    if block_bytes is None:
        block_bytes, vmem_limit = _budgets()
    else:
        vmem_limit = max(32 << 20, 4 * block_bytes)

    packed = (m == 1)
    if packed:
        # Lane-pack the flat N elements as (R, L).  The +inf tail pad gives
        # exp(-(inf + w)) == 0 exactly, so it needs no extra masking.
        flat = x.reshape(n)
        lane = min(_round_up(max(n, 1), 128), 2048)
        padded = _round_up(n, lane)
        if padded != n:
            flat = jnp.pad(flat, (0, padded - n), constant_values=jnp.inf)
        x2 = flat.reshape(padded // lane, lane)
    else:
        # TODO(synk): 1 < M < 128 could also be lane-repacked (needs a
        # transpose-aware layout for per-column sums); kept as (N, M) for now.
        x2 = x.reshape(n, m)

    n_rows, m2 = x2.shape
    tile_n, tile_m = _choose_tiles(n_rows, m2, itemsize, block_bytes)

    num_m = pl.cdiv(m2, tile_m)
    num_row_blocks = pl.cdiv(n_rows, tile_n)
    # Megacore: if the lane axis fits one tile, split the N reduction into two
    # partial accumulators so both TensorCores on v7x get work.
    num_s = 2 if (num_m == 1 and num_row_blocks >= 2) else 1
    blocks_per_split = pl.cdiv(num_row_blocks, num_s)
    need_valid = (num_s * blocks_per_split) != num_row_blocks
    need_mask = (num_row_blocks * tile_n) != n_rows

    w_arr = jnp.asarray(w, dtype=jnp.float32).reshape(1)

    kernel = functools.partial(
        oce_kernel,
        n_rows=n_rows, tile_n=tile_n, blocks_per_split=blocks_per_split,
        num_row_blocks=num_row_blocks, need_mask=need_mask, need_valid=need_valid,
    )

    def x_index_map(j, s, k):
        rb = s * blocks_per_split + k
        # Clamp padded (skipped) row blocks onto the last valid block; the
        # kernel gates their accumulation off with pl.when.
        return (jnp.minimum(rb, num_row_blocks - 1), j)

    cost = pl.CostEstimate(
        flops=2 * n_rows * m2,
        transcendentals=n_rows * m2,
        bytes_accessed=n_rows * m2 * itemsize + num_s * m2 * 4 + 4,
    )

    partial_sums = pl.pallas_call(
        kernel,
        out_shape=jax.ShapeDtypeStruct((num_s, 1, m2), jnp.float32),
        grid_spec=pltpu.PrefetchScalarGridSpec(
            num_scalar_prefetch=0,
            grid=(num_m, num_s, blocks_per_split),     # reduction axis last
            in_specs=[
                pl.BlockSpec(memory_space=pltpu.SMEM),         # w scalar
                pl.BlockSpec((tile_n, tile_m), x_index_map),   # x tile
            ],
            out_specs=pl.BlockSpec((1, 1, tile_m), lambda j, s, k: (s, 0, j)),
        ),
        compiler_params=pltpu.CompilerParams(
            dimension_semantics=("parallel", "parallel", "arbitrary"),
            vmem_limit_bytes=vmem_limit,
        ),
        cost_estimate=cost,
    )(w_arr, x2)

    # Finalize outside the kernel (tiny M-sized elementwise work):
    #   loss = w - mean(1 - exp(-(x + w))) = w - 1 + sum(exp(-(x + w))) / N
    w32 = jnp.asarray(w, dtype=jnp.float32)
    col_sums = jnp.sum(partial_sums, axis=0)[0]        # (m2,)
    inv_n = 1.0 / n
    if packed:
        loss = w32 - 1.0 + jnp.sum(col_sums) * inv_n   # scalar
    else:
        loss = w32 - 1.0 + col_sums * inv_n            # (M,)
    return jnp.reshape(loss, extra_shape)


if __name__ == "__main__":
    # Deterministic parameter init, per OCE.__init__: w = 0.0
    w_param = jnp.float32(0.0)

    # (N, *) with extra dims — small canonical case.
    key = jax.random.PRNGKey(0)
    x = jax.random.normal(key, (8, 4, 64), dtype=jnp.float32)
    result = oce_forward(x, w_param)
    jax.block_until_ready(result)
    ref = w_param - jnp.mean(1.0 - jnp.exp(-(x + w_param)), axis=0)
    assert result.shape == ref.shape == (4, 64)
    assert jnp.allclose(result, ref, atol=1e-5, rtol=1e-5)

    # Docstring case: 1-D pnl -> scalar loss, nonzero w, N not a tile multiple
    # (exercises the lane-packing path and the row mask).
    pnl = jax.random.normal(jax.random.PRNGKey(1), (10,), dtype=jnp.float32)
    w2 = jnp.float32(0.1)
    r2 = oce_forward(pnl, w2)
    jax.block_until_ready(r2)
    ref2 = w2 - jnp.mean(1.0 - jnp.exp(-(pnl + w2)), axis=0)
    assert r2.shape == ref2.shape == ()
    assert jnp.allclose(r2, ref2, atol=1e-5, rtol=1e-5)

    # Multi-block reduction + split accumulators + ragged edges, forced by a
    # tiny block budget so the path is exercised on every TPU generation.
    x3 = jax.random.normal(jax.random.PRNGKey(2), (300, 130), dtype=jnp.float32)
    w3 = jnp.float32(-0.2)
    r3 = oce_forward(x3, w3, block_bytes=64 * 1024)
    jax.block_until_ready(r3)
    ref3 = w3 - jnp.mean(1.0 - jnp.exp(-(x3 + w3)), axis=0)
    assert r3.shape == ref3.shape == (130,)
    assert jnp.allclose(r3, ref3, atol=1e-5, rtol=1e-5)

    # bf16 input path (dtype-aware tiling, f32 accumulation).
    xb = jax.random.normal(jax.random.PRNGKey(3), (64, 4, 32), dtype=jnp.bfloat16)
    rb_ = oce_forward(xb, w_param)
    jax.block_until_ready(rb_)
    refb = w_param - jnp.mean(1.0 - jnp.exp(-(xb.astype(jnp.float32) + w_param)), axis=0)
    assert rb_.shape == refb.shape == (4, 32)
    assert jnp.allclose(rb_, refb, atol=2e-2, rtol=2e-2)

    print("KERNEL_OK")
</pallas_src>

<mosaic_0001>
module attributes {stable_mosaic.version = 11 : i64} {
  func.func @oce_kernel(%arg0: i32, %arg1: i32, %arg2: i32, %arg3: memref<1xf32, #tpu.memory_space<smem>>, %arg4: memref<8x256xf32, #tpu.memory_space<vmem>>, %arg5: memref<1x1x256xf32, #tpu.memory_space<vmem>>) attributes {dimension_semantics = [#tpu.dimension_semantics<parallel>, #tpu.dimension_semantics<parallel>, #tpu.dimension_semantics<arbitrary>], iteration_bounds = array<i64: 1, 1, 1>, scalar_prefetch = 0 : i64, scratch_operands = 0 : i64, tpu.core_type = #tpu.core_type<tc>, window_params = [{transform_indices = @transform_0, window_bounds = array<i64: 1>}, {transform_indices = @transform_1, window_bounds = array<i64: 8, 256>}, {transform_indices = @transform_2, window_bounds = array<i64: 1, 1, 256>}]} {
    %c0_i32 = arith.constant 0 : i32
    %0 = arith.cmpi eq, %arg2, %c0_i32 : i32
    %1 = arith.extui %0 : i1 to i32
    %c0_i32_0 = arith.constant 0 : i32
    %2 = arith.cmpi ne, %1, %c0_i32_0 : i32
    scf.if %2 {
      %cst_10 = arith.constant 0.000000e+00 : f32
      %15 = vector.broadcast %cst_10 : f32 to vector<1x1x256xf32>
      %c0_11 = arith.constant 0 : index
      %c0_12 = arith.constant 0 : index
      %c0_13 = arith.constant 0 : index
      %16 = vector.load %arg5[%c0_11, %c0_12, %c0_13] : memref<1x1x256xf32, #tpu.memory_space<vmem>>, vector<1x1x256xf32>
      tpu.vector_store %arg5[%c0_11, %c0_12, %c0_13], %15 {strides = array<i32>} : memref<1x1x256xf32, #tpu.memory_space<vmem>>, vector<1x1x256xf32>,
    } else {
    }
    %c0 = arith.constant 0 : index
    %3 = memref.load %arg3[%c0] : memref<1xf32, #tpu.memory_space<smem>>
    %c0_1 = arith.constant 0 : index
    %c0_2 = arith.constant 0 : index
    %4 = vector.load %arg4[%c0_1, %c0_2] : memref<8x256xf32, #tpu.memory_space<vmem>>, vector<8x256xf32>
    %5 = vector.broadcast %3 : f32 to vector<8x256xf32>
    %6 = arith.addf %4, %5 : vector<8x256xf32>
    %cst = arith.constant 0.000000e+00 : f32
    %7 = vector.broadcast %cst : f32 to vector<8x256xf32>
    %8 = arith.subf %7, %6 : vector<8x256xf32>
    %9 = math.exp %8 : vector<8x256xf32>
    %c0_3 = arith.constant 0 : index
    %c0_4 = arith.constant 0 : index
    %c0_5 = arith.constant 0 : index
    %10 = vector.load %arg5[%c0_3, %c0_4, %c0_5] : memref<1x1x256xf32, #tpu.memory_space<vmem>>, vector<1x1x256xf32>
    %cst_6 = arith.constant dense<0.000000e+00> : vector<256xf32>
    %11 = vector.multi_reduction <add>, %9, %cst_6 [0] : vector<8x256xf32> to vector<256xf32>
    %12 = vector.shape_cast %11 : vector<256xf32> to vector<1x1x256xf32>
    %13 = arith.addf %10, %12 : vector<1x1x256xf32>
    %c0_7 = arith.constant 0 : index
    %c0_8 = arith.constant 0 : index
    %c0_9 = arith.constant 0 : index
    %14 = vector.load %arg5[%c0_7, %c0_8, %c0_9] : memref<1x1x256xf32, #tpu.memory_space<vmem>>, vector<1x1x256xf32>
    tpu.vector_store %arg5[%c0_7, %c0_8, %c0_9], %13 {strides = array<i32>} : memref<1x1x256xf32, #tpu.memory_space<vmem>>, vector<1x1x256xf32>,
    return
  }
  func.func @transform_0(%arg0: i32, %arg1: i32, %arg2: i32) -> i32 {
    %c0_i32 = arith.constant 0 : i32
    %c0_i32_0 = arith.constant 0 : i32
    return %c0_i32 : i32
  }
  func.func @transform_1(%arg0: i32, %arg1: i32, %arg2: i32) -> (i32, i32) {
    %c1_i32 = arith.constant 1 : i32
    %0 = arith.muli %arg1, %c1_i32 : i32
    %1 = arith.addi %0, %arg2 : i32
    %c0_i32 = arith.constant 0 : i32
    %2 = arith.minsi %1, %c0_i32 : i32
    %c0_i32_0 = arith.constant 0 : i32
    return %2, %arg0 : i32, i32
  }
  func.func @transform_2(%arg0: i32, %arg1: i32, %arg2: i32) -> (i32, i32, i32) {
    %c0_i32 = arith.constant 0 : i32
    %c0_i32_0 = arith.constant 0 : i32
    return %arg1, %c0_i32, %arg0 : i32, i32, i32
  }
}

</mosaic_0001>

<llo_original>
// kernel: tpu_custom_call.1
$region0: #{tpu_custom_call.1}
  #allocation0 [shape = 'u32[]', space=smem, size = 0x4, offset = 0x4, fixed_abs, tag = 'smem constant byte address 0x4 - core index']
  #allocation1 [shape = 'u32[144,128]{1,0:T(1,128)}', space=vmem, size = 0x12000, scoped, tag = 'internal scratch']
  #allocation2 [shape = 'f32[1]{0:T(128)S(6)}', space=smem, size = 0x200, scoped, tag = 'scoped memory for tpu_custom_call.1']
  %s0 = inlined_call_operand.<no memory space> [shape: f32[1], index: 0, kind: input, shape index: {}]
  %s1 = inlined_call_operand.hbm [shape: f32[8,256], index: 1, kind: input, shape index: {}]
  %s2 = inlined_call_operand.hbm [shape: f32[1,1,256], index: 2, kind: output, shape index: {}]
  %s3 = sld [smem:[#allocation0]]
  $region26: #{tpu_custom_call.1} parent=0
    _
  %s5 = ssub.s32 1, %s3
  %s6 = scalar_select 0, %s5, %s3
  %7 = sst [smem:[#allocation2]] %s0
  $region1: #{tpu_custom_call.1} parent=0
    #allocation3 [shape = 'u8[8192]{0}', space=vmem, size = 0x2000, scoped, tag = 'input window, operand 1, single buffered']
    #allocation4 [shape = 's32[1]{0}', space=sflag, size = 0x4, scoped, tag = 'scoped memory for tpu_custom_call.1']
    #allocation5 [shape = 's32[1]{0}', space=sflag, size = 0x4, scoped, tag = 'scoped memory for tpu_custom_call.1']
    #allocation6 [shape = 'u8[1024]{0}', space=vmem, size = 0x400, scoped, tag = 'output window, operand 0, single buffered']
    %8 = vsyncpa [#allocation4], 0
    %9 = vsyncpa [#allocation5], 0
    // Predicated region
    $region2: #{tpu_custom_call.1} parent=1 // pred_check
      _
    $region3: #{tpu_custom_call.1} parent=1 // pred_check_branch
      %11 = sbr.rel (0) target = $region5
    $region4: #{tpu_custom_call.1} parent=1 // pred_region
      _
    $region5: #{tpu_custom_call.1} parent=1 // pred_fallthru
      _
    // Predicated region
    $region6: #{tpu_custom_call.1} parent=1 // pred_check
      _
    $region7: #{tpu_custom_call.1} parent=1 // pred_check_branch
      %13 = sbr.rel (0) target = $region9
    $region8: #{tpu_custom_call.1} parent=1 // pred_region
      %s14 = sadd.s32 0, 0
      %p15 = scmp.lt.s32.totalorder %s14, 0
      %s16 = scalar_select %p15, %s14, 0
      %s18 = ssub.s32 256, 256
      %19 = vsyncadd [#allocation4], %s18
      %s20 = smul.addr %s16, 2
      %s21 = smul.addr %s20, 128
      %s22 = scalar_lea.hbm %s1, %s21
      %s24 = sshll.u32 [#allocation3], 4
      %s25 = int_to_ptr.vmem [resolvable:$true] %s24
      %27 = dma.hbm_to_vmem [thread:$0]  %s22, 256, %s25, [#allocation4]
    $region9: #{tpu_custom_call.1} parent=1 // pred_fallthru
      _
    // Predicated region
    $region10: #{tpu_custom_call.1} parent=1 // pred_check
      _
    $region11: #{tpu_custom_call.1} parent=1 // pred_check_branch
      %29 = sbr.rel (0) target = $region13
    $region12: #{tpu_custom_call.1} parent=1 // pred_region
      %30 = dma.done [#allocation4], 256
    $region13: #{tpu_custom_call.1} parent=1 // pred_fallthru
      _
    %s31 = sadd.s32 0, 0
    %p32 = scmp.lt.s32.totalorder %s31, 0
    %s33 = scalar_select %p32, %s31, 0
    %p34 = scmp.eq.s32.totalorder 0, 0
    // Predicated region
    $region14: #{tpu_custom_call.1} parent=1 // pred_check
      %p35 = pneg %p34
    $region15: #{tpu_custom_call.1} parent=1 // pred_check_branch
      %37 = sbr.rel (%p35) target = $region17
    $region16: #{tpu_custom_call.1} parent=1 // pred_region
      %v38 = vlaneseq
      %vm39 = vcmp.ge.s32.totalorder %v38, 0
      %vm40 = vcmp.lt.s32.totalorder %v38, 256
      %vm41 = vmand %vm39, %vm40
      %42 = vst.msk [vmem:[#allocation6] sm:$0x3] %vm41, 0.0
    $region17: #{tpu_custom_call.1} parent=1 // pred_fallthru
      _
    %s43 = sld [smem:[#allocation2]]
    %v44 = vld [vmem:[#allocation3] sm:$0xff]
    %v45 = vld [vmem:[#allocation3 + $0x8] sm:$0xff]
    %v46 = vstv %s43
    %v47 = vadd.f32 %v44, %v46
    %v48 = vadd.f32 %v45, %v46
    %v49 = vsub.f32 0.0, %v47
    %v50 = vsub.f32 0.0, %v48
    %v51 = vmul.f32 %v49, 1.442695
    %v52 = vpow.pop %v51
    %v53 = vmul.f32 %v50, 1.442695
    %v54 = vpow.pop %v53
    %v55 = vld [vmem:[#allocation6] sm:$0x3]
    %v56 = vrot.slane %v52, 4
    %v57 = vadd.f32 %v52, %v56
    %v58 = vrot.slane %v57, 2
    %v59 = vadd.f32 %v57, %v58
    %v60 = vrot.slane %v59, 1
    %v61 = vadd.f32 %v59, %v60
    %v62 = vrot.slane %v54, 4
    %v63 = vadd.f32 %v54, %v62
    %v64 = vrot.slane %v63, 2
    %v65 = vadd.f32 %v63, %v64
    %v66 = vrot.slane %v65, 1
    %v67 = vadd.f32 %v65, %v66
    %v70 = vcombine.low %v61, %v67
    %v72 = vunpack.c.l.s4 1966171168
    %v73 = vunpack.c.0.s8 %v72
    %v74 = vlaneseq
    %v75 = vshrl.u32 %v74, 7
    %v76 = vsub.s32 %v73, %v75
    %v77 = vrot.slane %v70, %v76
    %v79 = vunpack.c.l.s4 1966171168
    %v80 = vunpack.c.0.s8 %v79
    %v81 = vlaneseq
    %v82 = vshrl.u32 %v81, 7
    %v83 = vsub.s32 %v80, %v82
    %v84 = vrot.slane %v77, %v83
    %v86 = vadd.f32 %v55, %v84
    %v87 = vlaneseq
    %vm88 = vcmp.ge.s32.totalorder %v87, 0
    %vm89 = vcmp.lt.s32.totalorder %v87, 256
    %vm90 = vmand %vm88, %vm89
    %91 = vst.msk [vmem:[#allocation6] sm:$0x3] %vm90, %v86
    // Predicated region
    $region18: #{tpu_custom_call.1} parent=1 // pred_check
      _
    $region19: #{tpu_custom_call.1} parent=1 // pred_check_branch
      %93 = sbr.rel (0) target = $region21
    $region20: #{tpu_custom_call.1} parent=1 // pred_region
      %s95 = ssub.s32 32, 32
      %96 = vsyncadd [#allocation5], %s95
      %s98 = sshll.u32 [#allocation6], 4
      %s99 = int_to_ptr.vmem [resolvable:$true] %s98
      %101 = dma.vmem_to_hbm [thread:$0]  %s99, 32, %s2, [#allocation5]
    $region21: #{tpu_custom_call.1} parent=1 // pred_fallthru
      _
    // Predicated region
    $region22: #{tpu_custom_call.1} parent=1 // pred_check
      _
    $region23: #{tpu_custom_call.1} parent=1 // pred_check_branch
      %103 = sbr.rel (0) target = $region25
    $region24: #{tpu_custom_call.1} parent=1 // pred_region
      %104 = dma.done [#allocation5], 32
    $region25: #{tpu_custom_call.1} parent=1 // pred_fallthru
      _
    %105 = vsyncpa [#allocation4], 1
    %106 = vsyncpa [#allocation5], 1

</llo_original>
